<compile_context>
chip_gen: v6e
topology: v6e:2x2x1
jax: 0.10.0
libtpu: 0.0.40
codegen_flags: <defaults>
</compile_context>

<pallas_src>
import functools
import math

import numpy as np
import jax
import jax.numpy as jnp
from jax.experimental import pallas as pl
from jax.experimental.pallas import tpu as pltpu


# ----------------------------------------------------------------------------------
# Deterministic parameter init (mirrors init_predefined_omega from utils/spec_utils.py)
# ----------------------------------------------------------------------------------
def init_predefined_omega(num_theta, num_phi):
    theta_list = np.linspace(0.0, np.pi, num_theta)
    phi_list = np.linspace(0.0, 2.0 * np.pi, num_phi)
    omegas, omega_las, omega_mus = [], [], []
    for theta in theta_list:
        for phi in phi_list:
            w = np.array([np.sin(theta) * np.cos(phi),
                          np.sin(theta) * np.sin(phi),
                          np.cos(theta)])
            wl = np.array([np.sin(theta + np.pi / 2) * np.cos(phi),
                           np.sin(theta + np.pi / 2) * np.sin(phi),
                           np.cos(theta + np.pi / 2)])
            wm = np.cross(w, wl)
            omegas.append(w)
            omega_las.append(wl)
            omega_mus.append(wm)
    omega = np.stack(omegas).reshape(num_theta, num_phi, 3).astype(np.float32)
    omega_la = np.stack(omega_las).reshape(num_theta, num_phi, 3).astype(np.float32)
    omega_mu = np.stack(omega_mus).reshape(num_theta, num_phi, 3).astype(np.float32)
    return jnp.asarray(omega), jnp.asarray(omega_la), jnp.asarray(omega_mu)


# ----------------------------------------------------------------------------------
# Pallas kernel
#   o_ref   : (TR, 3k)   packed omega_o columns: [x0,y0,z0, x1,y1,z1, ...] per merged row
#   a/la/mu : (TR, k*P)  streamed, lane-dense
#   w/wl/wm : (3, k*P)   lane-tiled direction tables (resident)
#   s_ref   : (k, k*P)   group selection matrix: s[q, j] = 1 iff j // P == q (resident)
#   out_ref : (TR, k*P)
# ----------------------------------------------------------------------------------
def _ree_kernel(k, o_ref, a_ref, la_ref, mu_ref, w_ref, wl_ref, wm_ref, s_ref, out_ref):
    o = o_ref[...]          # (TR, 3k)
    s = s_ref[...]          # (k, KP)

    # Expand omega_o component c to the merged (TR, KP) lane layout:
    #   expanded[r, j] = omega_o[k*r + j//P, c]
    def expand(c):
        acc = o[:, c:c + 1] * s[0:1, :]
        for q in range(1, k):
            acc = acc + o[:, 3 * q + c: 3 * q + c + 1] * s[q:q + 1, :]
        return acc

    ox = expand(0)
    oy = expand(1)
    oz = expand(2)

    def dot3(tbl):          # tbl: (3, KP) -> (TR, KP); K=3 dot stays on the VPU (MXU would idle-pad)
        return ox * tbl[0:1, :] + oy * tbl[1:2, :] + oz * tbl[2:3, :]

    d_w = dot3(w_ref[...])
    d_la = dot3(wl_ref[...])
    d_mu = dot3(wm_ref[...])

    smooth = jnp.maximum(d_w, 0.0)                      # relu

    def softplus(x):                                    # numerically stable softplus
        return jnp.maximum(x, 0.0) + jnp.log1p(jnp.exp(-jnp.abs(x)))

    la = softplus(la_ref[...] - 1.0)
    mu = softplus(mu_ref[...] - 1.0)

    exp_in = -la * (d_la * d_la) - mu * (d_mu * d_mu)
    out_ref[...] = a_ref[...] * smooth * jnp.exp(exp_in)


def _lane_merge_factor(P):
    """How many batch rows to merge per 128-lane row so the merged width is lane-dense."""
    if P % 128 == 0:
        return 1
    k = 128 // math.gcd(P, 128)          # smallest k with (k*P) % 128 == 0
    if k <= 16:
        return k
    # TODO(synk): very irregular P (k would exceed 16) stays lane-padded (masked stores).
    return 1


# ----------------------------------------------------------------------------------
# Wrapper
# ----------------------------------------------------------------------------------
def rendering_equation_encoding(omega_o, a, la, mu, omega, omega_la, omega_mu,
                                *, tile_rows=2048):
    """omega_o: (N,3); a/la/mu: (N, nt, np, 1); omega*: (nt, np, 3) -> out (N, nt, np, 1)."""
    N = omega_o.shape[0]
    nt, nph = omega.shape[0], omega.shape[1]
    P = nt * nph

    k = _lane_merge_factor(P)
    KP = k * P

    # Pad N so merged rows group evenly and the merged-row count is a multiple of 8.
    pad_to = 8 * k
    N_pad = ((N + pad_to - 1) // pad_to) * pad_to
    pad = N_pad - N

    omega_o_f = omega_o.astype(jnp.float32)
    a_f = a.reshape(N, P).astype(jnp.float32)
    la_f = la.reshape(N, P).astype(jnp.float32)
    mu_f = mu.reshape(N, P).astype(jnp.float32)
    if pad:
        omega_o_f = jnp.pad(omega_o_f, ((0, pad), (0, 0)))
        a_f = jnp.pad(a_f, ((0, pad), (0, 0)))
        la_f = jnp.pad(la_f, ((0, pad), (0, 0)))
        mu_f = jnp.pad(mu_f, ((0, pad), (0, 0)))

    R = N_pad // k
    o_cols = omega_o_f.reshape(R, 3 * k)     # free view: [x,y,z] per packed row group
    a2 = a_f.reshape(R, KP)                  # free views, lane-dense
    la2 = la_f.reshape(R, KP)
    mu2 = mu_f.reshape(R, KP)

    # Tiny constants: direction tables lane-tiled k times, and the group-selection matrix.
    w_t = jnp.tile(omega.reshape(P, 3).T.astype(jnp.float32), (1, k))        # (3, KP)
    wl_t = jnp.tile(omega_la.reshape(P, 3).T.astype(jnp.float32), (1, k))
    wm_t = jnp.tile(omega_mu.reshape(P, 3).T.astype(jnp.float32), (1, k))
    sel = (jnp.arange(KP)[None, :] // P == jnp.arange(k)[:, None]).astype(jnp.float32)

    tr = min(tile_rows, R)
    grid = (pl.cdiv(R, tr),)

    def row_spec(last):
        return pl.BlockSpec((tr, last), lambda i: (i, 0))

    def res_spec(shape):
        return pl.BlockSpec(shape, lambda i: (0, 0))

    cost = pl.CostEstimate(
        flops=int(40 * N_pad * P),
        transcendentals=int(5 * N_pad * P),
        bytes_accessed=int(16 * N_pad * P + 12 * N_pad),
    )

    out = pl.pallas_call(
        functools.partial(_ree_kernel, k),
        out_shape=jax.ShapeDtypeStruct((R, KP), jnp.float32),
        grid=grid,
        in_specs=[
            row_spec(3 * k),      # o_cols   (streamed)
            row_spec(KP),         # a        (streamed)
            row_spec(KP),         # la       (streamed)
            row_spec(KP),         # mu       (streamed)
            res_spec((3, KP)),    # omega    (resident)
            res_spec((3, KP)),    # omega_la (resident)
            res_spec((3, KP)),    # omega_mu (resident)
            res_spec((k, KP)),    # sel      (resident)
        ],
        out_specs=row_spec(KP),
        compiler_params=pltpu.CompilerParams(dimension_semantics=("parallel",)),
        cost_estimate=cost,
    )(o_cols, a2, la2, mu2, w_t, wl_t, wm_t, sel)

    out = out.reshape(N_pad, P)[:N]
    return out.reshape(N, nt, nph, 1)


# ----------------------------------------------------------------------------------
# Pure-JAX reference (mirrors the PyTorch forward exactly)
# ----------------------------------------------------------------------------------
def reference_forward(omega_o, a, la, mu, omega, omega_la, omega_mu):
    oo = omega_o[:, None, None]                                           # (N,1,1,3)
    smooth = jax.nn.relu((oo * omega[None]).sum(-1, keepdims=True))       # (N,nt,np,1)
    la_s = jax.nn.softplus(la - 1.0)
    mu_s = jax.nn.softplus(mu - 1.0)
    exp_in = (-la_s * ((omega_la[None] * oo).sum(-1, keepdims=True)) ** 2
              - mu_s * ((omega_mu[None] * oo).sum(-1, keepdims=True)) ** 2)
    return a * smooth * jnp.exp(exp_in)


if __name__ == "__main__":
    num_theta, num_phi = 4, 8          # P = 32 directions
    omega, omega_la, omega_mu = init_predefined_omega(num_theta, num_phi)

    def make_inputs(N, seed=0):
        key = jax.random.PRNGKey(seed)
        k1, k2, k3, k4 = jax.random.split(key, 4)
        omega_o = jax.random.normal(k1, (N, 3), dtype=jnp.float32)
        omega_o = omega_o / jnp.linalg.norm(omega_o, axis=-1, keepdims=True)
        a = jax.random.normal(k2, (N, num_theta, num_phi, 1), dtype=jnp.float32)
        la = jax.random.normal(k3, (N, num_theta, num_phi, 1), dtype=jnp.float32)
        mu = jax.random.normal(k4, (N, num_theta, num_phi, 1), dtype=jnp.float32)
        return omega_o, a, la, mu

    # Small-shape test consistent with the module (N=8 outgoing directions).
    omega_o, a, la, mu = make_inputs(8, seed=0)
    out = rendering_equation_encoding(omega_o, a, la, mu, omega, omega_la, omega_mu)
    out = jax.block_until_ready(out)
    ref = reference_forward(omega_o, a, la, mu, omega, omega_la, omega_mu)
    assert out.shape == (8, num_theta, num_phi, 1)
    assert jnp.allclose(out, ref, atol=1e-5, rtol=1e-5), "mismatch vs reference (N=8)"

    # Second check exercising padding + multi-tile grid (small tile_rows on purpose).
    omega_o, a, la, mu = make_inputs(200, seed=0)
    out2 = rendering_equation_encoding(omega_o, a, la, mu, omega, omega_la, omega_mu,
                                       tile_rows=16)
    out2 = jax.block_until_ready(out2)
    ref2 = reference_forward(omega_o, a, la, mu, omega, omega_la, omega_mu)
    assert out2.shape == (200, num_theta, num_phi, 1)
    assert jnp.allclose(out2, ref2, atol=1e-5, rtol=1e-5), "mismatch vs reference (N=200)"

    print("KERNEL_OK")
</pallas_src>

<mosaic_0001>
module attributes {stable_mosaic.version = 11 : i64} {
  func.func @_ree_kernel(%arg0: i32, %arg1: memref<8x12xf32, #tpu.memory_space<vmem>>, %arg2: memref<8x128xf32, #tpu.memory_space<vmem>>, %arg3: memref<8x128xf32, #tpu.memory_space<vmem>>, %arg4: memref<8x128xf32, #tpu.memory_space<vmem>>, %arg5: memref<3x128xf32, #tpu.memory_space<vmem>>, %arg6: memref<3x128xf32, #tpu.memory_space<vmem>>, %arg7: memref<3x128xf32, #tpu.memory_space<vmem>>, %arg8: memref<4x128xf32, #tpu.memory_space<vmem>>, %arg9: memref<8x128xf32, #tpu.memory_space<vmem>>) attributes {dimension_semantics = [#tpu.dimension_semantics<parallel>], iteration_bounds = array<i64: 1>, scalar_prefetch = 0 : i64, scratch_operands = 0 : i64, tpu.core_type = #tpu.core_type<tc>, window_params = [{transform_indices = @transform_0, window_bounds = array<i64: 8, 12>}, {transform_indices = @transform_1, window_bounds = array<i64: 8, 128>}, {transform_indices = @transform_2, window_bounds = array<i64: 8, 128>}, {transform_indices = @transform_3, window_bounds = array<i64: 8, 128>}, {pipeline_mode = #tpu.pipeline_mode<synchronous>, transform_indices = @transform_4, window_bounds = array<i64: 3, 128>}, {pipeline_mode = #tpu.pipeline_mode<synchronous>, transform_indices = @transform_5, window_bounds = array<i64: 3, 128>}, {pipeline_mode = #tpu.pipeline_mode<synchronous>, transform_indices = @transform_6, window_bounds = array<i64: 3, 128>}, {pipeline_mode = #tpu.pipeline_mode<synchronous>, transform_indices = @transform_7, window_bounds = array<i64: 4, 128>}, {transform_indices = @transform_8, window_bounds = array<i64: 8, 128>}]} {
    %c0 = arith.constant 0 : index
    %c0_0 = arith.constant 0 : index
    %0 = vector.load %arg1[%c0, %c0_0] : memref<8x12xf32, #tpu.memory_space<vmem>>, vector<8x12xf32>
    %c0_1 = arith.constant 0 : index
    %c0_2 = arith.constant 0 : index
    %1 = vector.load %arg8[%c0_1, %c0_2] : memref<4x128xf32, #tpu.memory_space<vmem>>, vector<4x128xf32>
    %2 = vector.extract_strided_slice %0 {offsets = [0, 0], sizes = [8, 1], strides = [1, 1]} : vector<8x12xf32> to vector<8x1xf32>
    %3 = vector.extract_strided_slice %1 {offsets = [0, 0], sizes = [1, 128], strides = [1, 1]} : vector<4x128xf32> to vector<1x128xf32>
    %4 = vector.broadcast %2 : vector<8x1xf32> to vector<8x128xf32>
    %5 = vector.broadcast %3 : vector<1x128xf32> to vector<8x128xf32>
    %6 = arith.mulf %4, %5 : vector<8x128xf32>
    %7 = vector.extract_strided_slice %0 {offsets = [0, 3], sizes = [8, 1], strides = [1, 1]} : vector<8x12xf32> to vector<8x1xf32>
    %8 = vector.extract_strided_slice %1 {offsets = [1, 0], sizes = [1, 128], strides = [1, 1]} : vector<4x128xf32> to vector<1x128xf32>
    %9 = vector.broadcast %7 : vector<8x1xf32> to vector<8x128xf32>
    %10 = vector.broadcast %8 : vector<1x128xf32> to vector<8x128xf32>
    %11 = arith.mulf %9, %10 : vector<8x128xf32>
    %12 = arith.addf %6, %11 : vector<8x128xf32>
    %13 = vector.extract_strided_slice %0 {offsets = [0, 6], sizes = [8, 1], strides = [1, 1]} : vector<8x12xf32> to vector<8x1xf32>
    %14 = vector.extract_strided_slice %1 {offsets = [2, 0], sizes = [1, 128], strides = [1, 1]} : vector<4x128xf32> to vector<1x128xf32>
    %15 = vector.broadcast %13 : vector<8x1xf32> to vector<8x128xf32>
    %16 = vector.broadcast %14 : vector<1x128xf32> to vector<8x128xf32>
    %17 = arith.mulf %15, %16 : vector<8x128xf32>
    %18 = arith.addf %12, %17 : vector<8x128xf32>
    %19 = vector.extract_strided_slice %0 {offsets = [0, 9], sizes = [8, 1], strides = [1, 1]} : vector<8x12xf32> to vector<8x1xf32>
    %20 = vector.extract_strided_slice %1 {offsets = [3, 0], sizes = [1, 128], strides = [1, 1]} : vector<4x128xf32> to vector<1x128xf32>
    %21 = vector.broadcast %19 : vector<8x1xf32> to vector<8x128xf32>
    %22 = vector.broadcast %20 : vector<1x128xf32> to vector<8x128xf32>
    %23 = arith.mulf %21, %22 : vector<8x128xf32>
    %24 = arith.addf %18, %23 : vector<8x128xf32>
    %25 = vector.extract_strided_slice %0 {offsets = [0, 1], sizes = [8, 1], strides = [1, 1]} : vector<8x12xf32> to vector<8x1xf32>
    %26 = vector.extract_strided_slice %1 {offsets = [0, 0], sizes = [1, 128], strides = [1, 1]} : vector<4x128xf32> to vector<1x128xf32>
    %27 = vector.broadcast %25 : vector<8x1xf32> to vector<8x128xf32>
    %28 = vector.broadcast %26 : vector<1x128xf32> to vector<8x128xf32>
    %29 = arith.mulf %27, %28 : vector<8x128xf32>
    %30 = vector.extract_strided_slice %0 {offsets = [0, 4], sizes = [8, 1], strides = [1, 1]} : vector<8x12xf32> to vector<8x1xf32>
    %31 = vector.extract_strided_slice %1 {offsets = [1, 0], sizes = [1, 128], strides = [1, 1]} : vector<4x128xf32> to vector<1x128xf32>
    %32 = vector.broadcast %30 : vector<8x1xf32> to vector<8x128xf32>
    %33 = vector.broadcast %31 : vector<1x128xf32> to vector<8x128xf32>
    %34 = arith.mulf %32, %33 : vector<8x128xf32>
    %35 = arith.addf %29, %34 : vector<8x128xf32>
    %36 = vector.extract_strided_slice %0 {offsets = [0, 7], sizes = [8, 1], strides = [1, 1]} : vector<8x12xf32> to vector<8x1xf32>
    %37 = vector.extract_strided_slice %1 {offsets = [2, 0], sizes = [1, 128], strides = [1, 1]} : vector<4x128xf32> to vector<1x128xf32>
    %38 = vector.broadcast %36 : vector<8x1xf32> to vector<8x128xf32>
    %39 = vector.broadcast %37 : vector<1x128xf32> to vector<8x128xf32>
    %40 = arith.mulf %38, %39 : vector<8x128xf32>
    %41 = arith.addf %35, %40 : vector<8x128xf32>
    %42 = vector.extract_strided_slice %0 {offsets = [0, 10], sizes = [8, 1], strides = [1, 1]} : vector<8x12xf32> to vector<8x1xf32>
    %43 = vector.extract_strided_slice %1 {offsets = [3, 0], sizes = [1, 128], strides = [1, 1]} : vector<4x128xf32> to vector<1x128xf32>
    %44 = vector.broadcast %42 : vector<8x1xf32> to vector<8x128xf32>
    %45 = vector.broadcast %43 : vector<1x128xf32> to vector<8x128xf32>
    %46 = arith.mulf %44, %45 : vector<8x128xf32>
    %47 = arith.addf %41, %46 : vector<8x128xf32>
    %48 = vector.extract_strided_slice %0 {offsets = [0, 2], sizes = [8, 1], strides = [1, 1]} : vector<8x12xf32> to vector<8x1xf32>
    %49 = vector.extract_strided_slice %1 {offsets = [0, 0], sizes = [1, 128], strides = [1, 1]} : vector<4x128xf32> to vector<1x128xf32>
    %50 = vector.broadcast %48 : vector<8x1xf32> to vector<8x128xf32>
    %51 = vector.broadcast %49 : vector<1x128xf32> to vector<8x128xf32>
    %52 = arith.mulf %50, %51 : vector<8x128xf32>
    %53 = vector.extract_strided_slice %0 {offsets = [0, 5], sizes = [8, 1], strides = [1, 1]} : vector<8x12xf32> to vector<8x1xf32>
    %54 = vector.extract_strided_slice %1 {offsets = [1, 0], sizes = [1, 128], strides = [1, 1]} : vector<4x128xf32> to vector<1x128xf32>
    %55 = vector.broadcast %53 : vector<8x1xf32> to vector<8x128xf32>
    %56 = vector.broadcast %54 : vector<1x128xf32> to vector<8x128xf32>
    %57 = arith.mulf %55, %56 : vector<8x128xf32>
    %58 = arith.addf %52, %57 : vector<8x128xf32>
    %59 = vector.extract_strided_slice %0 {offsets = [0, 8], sizes = [8, 1], strides = [1, 1]} : vector<8x12xf32> to vector<8x1xf32>
    %60 = vector.extract_strided_slice %1 {offsets = [2, 0], sizes = [1, 128], strides = [1, 1]} : vector<4x128xf32> to vector<1x128xf32>
    %61 = vector.broadcast %59 : vector<8x1xf32> to vector<8x128xf32>
    %62 = vector.broadcast %60 : vector<1x128xf32> to vector<8x128xf32>
    %63 = arith.mulf %61, %62 : vector<8x128xf32>
    %64 = arith.addf %58, %63 : vector<8x128xf32>
    %65 = vector.extract_strided_slice %0 {offsets = [0, 11], sizes = [8, 1], strides = [1, 1]} : vector<8x12xf32> to vector<8x1xf32>
    %66 = vector.extract_strided_slice %1 {offsets = [3, 0], sizes = [1, 128], strides = [1, 1]} : vector<4x128xf32> to vector<1x128xf32>
    %67 = vector.broadcast %65 : vector<8x1xf32> to vector<8x128xf32>
    %68 = vector.broadcast %66 : vector<1x128xf32> to vector<8x128xf32>
    %69 = arith.mulf %67, %68 : vector<8x128xf32>
    %70 = arith.addf %64, %69 : vector<8x128xf32>
    %c0_3 = arith.constant 0 : index
    %c0_4 = arith.constant 0 : index
    %71 = vector.load %arg5[%c0_3, %c0_4] : memref<3x128xf32, #tpu.memory_space<vmem>>, vector<3x128xf32>
    %72 = vector.extract_strided_slice %71 {offsets = [0, 0], sizes = [1, 128], strides = [1, 1]} : vector<3x128xf32> to vector<1x128xf32>
    %73 = vector.broadcast %72 : vector<1x128xf32> to vector<8x128xf32>
    %74 = arith.mulf %24, %73 : vector<8x128xf32>
    %75 = vector.extract_strided_slice %71 {offsets = [1, 0], sizes = [1, 128], strides = [1, 1]} : vector<3x128xf32> to vector<1x128xf32>
    %76 = vector.broadcast %75 : vector<1x128xf32> to vector<8x128xf32>
    %77 = arith.mulf %47, %76 : vector<8x128xf32>
    %78 = arith.addf %74, %77 : vector<8x128xf32>
    %79 = vector.extract_strided_slice %71 {offsets = [2, 0], sizes = [1, 128], strides = [1, 1]} : vector<3x128xf32> to vector<1x128xf32>
    %80 = vector.broadcast %79 : vector<1x128xf32> to vector<8x128xf32>
    %81 = arith.mulf %70, %80 : vector<8x128xf32>
    %82 = arith.addf %78, %81 : vector<8x128xf32>
    %c0_5 = arith.constant 0 : index
    %c0_6 = arith.constant 0 : index
    %83 = vector.load %arg6[%c0_5, %c0_6] : memref<3x128xf32, #tpu.memory_space<vmem>>, vector<3x128xf32>
    %84 = vector.extract_strided_slice %83 {offsets = [0, 0], sizes = [1, 128], strides = [1, 1]} : vector<3x128xf32> to vector<1x128xf32>
    %85 = vector.broadcast %84 : vector<1x128xf32> to vector<8x128xf32>
    %86 = arith.mulf %24, %85 : vector<8x128xf32>
    %87 = vector.extract_strided_slice %83 {offsets = [1, 0], sizes = [1, 128], strides = [1, 1]} : vector<3x128xf32> to vector<1x128xf32>
    %88 = vector.broadcast %87 : vector<1x128xf32> to vector<8x128xf32>
    %89 = arith.mulf %47, %88 : vector<8x128xf32>
    %90 = arith.addf %86, %89 : vector<8x128xf32>
    %91 = vector.extract_strided_slice %83 {offsets = [2, 0], sizes = [1, 128], strides = [1, 1]} : vector<3x128xf32> to vector<1x128xf32>
    %92 = vector.broadcast %91 : vector<1x128xf32> to vector<8x128xf32>
    %93 = arith.mulf %70, %92 : vector<8x128xf32>
    %94 = arith.addf %90, %93 : vector<8x128xf32>
    %c0_7 = arith.constant 0 : index
    %c0_8 = arith.constant 0 : index
    %95 = vector.load %arg7[%c0_7, %c0_8] : memref<3x128xf32, #tpu.memory_space<vmem>>, vector<3x128xf32>
    %96 = vector.extract_strided_slice %95 {offsets = [0, 0], sizes = [1, 128], strides = [1, 1]} : vector<3x128xf32> to vector<1x128xf32>
    %97 = vector.broadcast %96 : vector<1x128xf32> to vector<8x128xf32>
    %98 = arith.mulf %24, %97 : vector<8x128xf32>
    %99 = vector.extract_strided_slice %95 {offsets = [1, 0], sizes = [1, 128], strides = [1, 1]} : vector<3x128xf32> to vector<1x128xf32>
    %100 = vector.broadcast %99 : vector<1x128xf32> to vector<8x128xf32>
    %101 = arith.mulf %47, %100 : vector<8x128xf32>
    %102 = arith.addf %98, %101 : vector<8x128xf32>
    %103 = vector.extract_strided_slice %95 {offsets = [2, 0], sizes = [1, 128], strides = [1, 1]} : vector<3x128xf32> to vector<1x128xf32>
    %104 = vector.broadcast %103 : vector<1x128xf32> to vector<8x128xf32>
    %105 = arith.mulf %70, %104 : vector<8x128xf32>
    %106 = arith.addf %102, %105 : vector<8x128xf32>
    %cst = arith.constant 0.000000e+00 : f32
    %107 = vector.broadcast %cst : f32 to vector<8x128xf32>
    %108 = arith.maximumf %82, %107 : vector<8x128xf32>
    %c0_9 = arith.constant 0 : index
    %c0_10 = arith.constant 0 : index
    %109 = vector.load %arg3[%c0_9, %c0_10] : memref<8x128xf32, #tpu.memory_space<vmem>>, vector<8x128xf32>
    %cst_11 = arith.constant 1.000000e+00 : f32
    %110 = vector.broadcast %cst_11 : f32 to vector<8x128xf32>
    %111 = arith.subf %109, %110 : vector<8x128xf32>
    %cst_12 = arith.constant 0.000000e+00 : f32
    %112 = vector.broadcast %cst_12 : f32 to vector<8x128xf32>
    %113 = arith.maximumf %111, %112 : vector<8x128xf32>
    %114 = math.absf %111 : vector<8x128xf32>
    %cst_13 = arith.constant 0.000000e+00 : f32
    %115 = vector.broadcast %cst_13 : f32 to vector<8x128xf32>
    %116 = arith.subf %115, %114 : vector<8x128xf32>
    %117 = math.exp %116 : vector<8x128xf32>
    %118 = math.log1p %117 : vector<8x128xf32>
    %119 = arith.addf %113, %118 : vector<8x128xf32>
    %c0_14 = arith.constant 0 : index
    %c0_15 = arith.constant 0 : index
    %120 = vector.load %arg4[%c0_14, %c0_15] : memref<8x128xf32, #tpu.memory_space<vmem>>, vector<8x128xf32>
    %cst_16 = arith.constant 1.000000e+00 : f32
    %121 = vector.broadcast %cst_16 : f32 to vector<8x128xf32>
    %122 = arith.subf %120, %121 : vector<8x128xf32>
    %cst_17 = arith.constant 0.000000e+00 : f32
    %123 = vector.broadcast %cst_17 : f32 to vector<8x128xf32>
    %124 = arith.maximumf %122, %123 : vector<8x128xf32>
    %125 = math.absf %122 : vector<8x128xf32>
    %cst_18 = arith.constant 0.000000e+00 : f32
    %126 = vector.broadcast %cst_18 : f32 to vector<8x128xf32>
    %127 = arith.subf %126, %125 : vector<8x128xf32>
    %128 = math.exp %127 : vector<8x128xf32>
    %129 = math.log1p %128 : vector<8x128xf32>
    %130 = arith.addf %124, %129 : vector<8x128xf32>
    %cst_19 = arith.constant 0.000000e+00 : f32
    %131 = vector.broadcast %cst_19 : f32 to vector<8x128xf32>
    %132 = arith.subf %131, %119 : vector<8x128xf32>
    %133 = arith.mulf %94, %94 : vector<8x128xf32>
    %134 = arith.mulf %132, %133 : vector<8x128xf32>
    %135 = arith.mulf %106, %106 : vector<8x128xf32>
    %136 = arith.mulf %130, %135 : vector<8x128xf32>
    %137 = arith.subf %134, %136 : vector<8x128xf32>
    %c0_20 = arith.constant 0 : index
    %c0_21 = arith.constant 0 : index
    %138 = vector.load %arg2[%c0_20, %c0_21] : memref<8x128xf32, #tpu.memory_space<vmem>>, vector<8x128xf32>
    %139 = arith.mulf %138, %108 : vector<8x128xf32>
    %140 = math.exp %137 : vector<8x128xf32>
    %141 = arith.mulf %139, %140 : vector<8x128xf32>
    %c0_22 = arith.constant 0 : index
    %c0_23 = arith.constant 0 : index
    %142 = vector.load %arg9[%c0_22, %c0_23] : memref<8x128xf32, #tpu.memory_space<vmem>>, vector<8x128xf32>
    tpu.vector_store %arg9[%c0_22, %c0_23], %141 {strides = array<i32>} : memref<8x128xf32, #tpu.memory_space<vmem>>, vector<8x128xf32>,
    return
  }
  func.func @transform_0(%arg0: i32) -> (i32, i32) {
    %c0_i32 = arith.constant 0 : i32
    %c0_i32_0 = arith.constant 0 : i32
    return %arg0, %c0_i32 : i32, i32
  }
  func.func @transform_1(%arg0: i32) -> (i32, i32) {
    %c0_i32 = arith.constant 0 : i32
    %c0_i32_0 = arith.constant 0 : i32
    return %arg0, %c0_i32 : i32, i32
  }
  func.func @transform_2(%arg0: i32) -> (i32, i32) {
    %c0_i32 = arith.constant 0 : i32
    %c0_i32_0 = arith.constant 0 : i32
    return %arg0, %c0_i32 : i32, i32
  }
  func.func @transform_3(%arg0: i32) -> (i32, i32) {
    %c0_i32 = arith.constant 0 : i32
    %c0_i32_0 = arith.constant 0 : i32
    return %arg0, %c0_i32 : i32, i32
  }
  func.func @transform_4(%arg0: i32) -> (i32, i32) {
    %c0_i32 = arith.constant 0 : i32
    %c0_i32_0 = arith.constant 0 : i32
    %c0_i32_1 = arith.constant 0 : i32
    return %c0_i32, %c0_i32_0 : i32, i32
  }
  func.func @transform_5(%arg0: i32) -> (i32, i32) {
    %c0_i32 = arith.constant 0 : i32
    %c0_i32_0 = arith.constant 0 : i32
    %c0_i32_1 = arith.constant 0 : i32
    return %c0_i32, %c0_i32_0 : i32, i32
  }
  func.func @transform_6(%arg0: i32) -> (i32, i32) {
    %c0_i32 = arith.constant 0 : i32
    %c0_i32_0 = arith.constant 0 : i32
    %c0_i32_1 = arith.constant 0 : i32
    return %c0_i32, %c0_i32_0 : i32, i32
  }
  func.func @transform_7(%arg0: i32) -> (i32, i32) {
    %c0_i32 = arith.constant 0 : i32
    %c0_i32_0 = arith.constant 0 : i32
    %c0_i32_1 = arith.constant 0 : i32
    return %c0_i32, %c0_i32_0 : i32, i32
  }
  func.func @transform_8(%arg0: i32) -> (i32, i32) {
    %c0_i32 = arith.constant 0 : i32
    %c0_i32_0 = arith.constant 0 : i32
    return %arg0, %c0_i32 : i32, i32
  }
}

</mosaic_0001>

<llo_original>
// kernel: tpu_custom_call.1
$region0: #{tpu_custom_call.1}
  #allocation0 [shape = 'u32[]', space=smem, size = 0x4, offset = 0x4, fixed_abs, tag = 'smem constant byte address 0x4 - core index']
  #allocation1 [shape = 'u32[144,128]{1,0:T(1,128)}', space=vmem, size = 0x12000, scoped, tag = 'internal scratch']
  %s0 = inlined_call_operand.hbm [shape: f32[8,12], index: 0, kind: input, shape index: {}]
  %s1 = inlined_call_operand.hbm [shape: f32[8,128], index: 1, kind: input, shape index: {}]
  %s2 = inlined_call_operand.hbm [shape: f32[8,128], index: 2, kind: input, shape index: {}]
  %s3 = inlined_call_operand.hbm [shape: f32[8,128], index: 3, kind: input, shape index: {}]
  %s4 = inlined_call_operand.vmem [shape: f32[3,128], index: 4, kind: input, shape index: {}]
  %s5 = inlined_call_operand.vmem [shape: f32[3,128], index: 5, kind: input, shape index: {}]
  %s6 = inlined_call_operand.hbm [shape: f32[3,128], index: 6, kind: input, shape index: {}]
  %s7 = inlined_call_operand.vmem [shape: f32[4,128], index: 7, kind: input, shape index: {}]
  %s8 = inlined_call_operand.hbm [shape: f32[8,128], index: 8, kind: output, shape index: {}]
  %s9 = sld [smem:[#allocation0]]
  $region62: #{tpu_custom_call.1} parent=0
    _
  %s11 = ssub.s32 1, %s9
  %s12 = scalar_select 0, %s11, %s9
  $region1: #{tpu_custom_call.1} parent=0
    #allocation2 [shape = 'u8[4096]{0}', space=vmem, size = 0x1000, scoped, tag = 'input window, operand 0, single buffered']
    #allocation3 [shape = 's32[1]{0}', space=sflag, size = 0x4, scoped, tag = 'scoped memory for tpu_custom_call.1']
    #allocation4 [shape = 's32[1]{0}', space=sflag, size = 0x4, scoped, tag = 'scoped memory for tpu_custom_call.1']
    #allocation5 [shape = 'u8[4096]{0}', space=vmem, size = 0x1000, scoped, tag = 'input window, operand 1, single buffered']
    #allocation6 [shape = 's32[1]{0}', space=sflag, size = 0x4, scoped, tag = 'scoped memory for tpu_custom_call.1']
    #allocation7 [shape = 'u8[4096]{0}', space=vmem, size = 0x1000, scoped, tag = 'input window, operand 2, single buffered']
    #allocation8 [shape = 'u8[4096]{0}', space=vmem, size = 0x1000, scoped, tag = 'input window, operand 3, single buffered']
    #allocation9 [shape = 's32[1]{0}', space=sflag, size = 0x4, scoped, tag = 'scoped memory for tpu_custom_call.1']
    #allocation10 [shape = 'u8[2048]{0}', space=vmem, size = 0x800, scoped, tag = 'input window, operand 6, single buffered']
    #allocation11 [shape = 'u8[4096]{0}', space=vmem, size = 0x1000, scoped, tag = 'output window, operand 0, single buffered']
    %13 = vsyncpa [#allocation3], 0
    %14 = vsyncpa [#allocation6], 0
    %15 = vsyncpa [#allocation9], 0
    %16 = vsyncpa [#allocation4], 0
    // Predicated region
    $region2: #{tpu_custom_call.1} parent=1 // pred_check
      _
    $region3: #{tpu_custom_call.1} parent=1 // pred_check_branch
      %18 = sbr.rel (0) target = $region5
    $region4: #{tpu_custom_call.1} parent=1 // pred_region
      %s20 = ssub.s32 128, 128
      %21 = vsyncadd [#allocation3], %s20
      %s23 = sshll.u32 [#allocation2], 4
      %s24 = int_to_ptr.vmem [resolvable:$true] %s23
      %26 = dma.hbm_to_vmem [thread:$0]  %s0, 128, %s24, [#allocation3]
    $region5: #{tpu_custom_call.1} parent=1 // pred_fallthru
      _
    // Predicated region
    $region6: #{tpu_custom_call.1} parent=1 // pred_check
      _
    $region7: #{tpu_custom_call.1} parent=1 // pred_check_branch
      %28 = sbr.rel (0) target = $region9
    $region8: #{tpu_custom_call.1} parent=1 // pred_region
      %s30 = ssub.s32 128, 128
      %31 = vsyncadd [#allocation6], %s30
      %s33 = sshll.u32 [#allocation5], 4
      %s34 = int_to_ptr.vmem [resolvable:$true] %s33
      %36 = dma.hbm_to_vmem [thread:$0]  %s1, 128, %s34, [#allocation6]
    $region9: #{tpu_custom_call.1} parent=1 // pred_fallthru
      _
    // Predicated region
    $region10: #{tpu_custom_call.1} parent=1 // pred_check
      _
    $region11: #{tpu_custom_call.1} parent=1 // pred_check_branch
      %38 = sbr.rel (0) target = $region13
    $region12: #{tpu_custom_call.1} parent=1 // pred_region
      %s40 = ssub.s32 128, 128
      %41 = vsyncadd [#allocation6], %s40
      %s43 = sshll.u32 [#allocation7], 4
      %s44 = int_to_ptr.vmem [resolvable:$true] %s43
      %46 = dma.hbm_to_vmem [thread:$0]  %s2, 128, %s44, [#allocation6]
    $region13: #{tpu_custom_call.1} parent=1 // pred_fallthru
      _
    // Predicated region
    $region14: #{tpu_custom_call.1} parent=1 // pred_check
      _
    $region15: #{tpu_custom_call.1} parent=1 // pred_check_branch
      %48 = sbr.rel (0) target = $region17
    $region16: #{tpu_custom_call.1} parent=1 // pred_region
      %s50 = ssub.s32 128, 128
      %51 = vsyncadd [#allocation9], %s50
      %s53 = sshll.u32 [#allocation8], 4
      %s54 = int_to_ptr.vmem [resolvable:$true] %s53
      %56 = dma.hbm_to_vmem [thread:$0]  %s3, 128, %s54, [#allocation9]
    $region17: #{tpu_custom_call.1} parent=1 // pred_fallthru
      _
    // Predicated region
    $region18: #{tpu_custom_call.1} parent=1 // pred_check
      _
    $region19: #{tpu_custom_call.1} parent=1 // pred_check_branch
      %58 = sbr.rel (0) target = $region21
    $region20: #{tpu_custom_call.1} parent=1 // pred_region
      _
    $region21: #{tpu_custom_call.1} parent=1 // pred_fallthru
      _
    // Predicated region
    $region22: #{tpu_custom_call.1} parent=1 // pred_check
      _
    $region23: #{tpu_custom_call.1} parent=1 // pred_check_branch
      %60 = sbr.rel (0) target = $region25
    $region24: #{tpu_custom_call.1} parent=1 // pred_region
      _
    $region25: #{tpu_custom_call.1} parent=1 // pred_fallthru
      _
    // Predicated region
    $region26: #{tpu_custom_call.1} parent=1 // pred_check
      _
    $region27: #{tpu_custom_call.1} parent=1 // pred_check_branch
      %62 = sbr.rel (0) target = $region29
    $region28: #{tpu_custom_call.1} parent=1 // pred_region
      %s64 = ssub.s32 64, 64
      %65 = vsyncadd [#allocation9], %s64
      %s67 = sshll.u32 [#allocation10], 4
      %s68 = int_to_ptr.vmem [resolvable:$true] %s67
      %70 = dma.hbm_to_vmem [thread:$0]  %s6, 64, %s68, [#allocation9]
    $region29: #{tpu_custom_call.1} parent=1 // pred_fallthru
      _
    // Predicated region
    $region30: #{tpu_custom_call.1} parent=1 // pred_check
      _
    $region31: #{tpu_custom_call.1} parent=1 // pred_check_branch
      %72 = sbr.rel (0) target = $region33
    $region32: #{tpu_custom_call.1} parent=1 // pred_region
      _
    $region33: #{tpu_custom_call.1} parent=1 // pred_fallthru
      _
    // Predicated region
    $region34: #{tpu_custom_call.1} parent=1 // pred_check
      _
    $region35: #{tpu_custom_call.1} parent=1 // pred_check_branch
      %74 = sbr.rel (0) target = $region37
    $region36: #{tpu_custom_call.1} parent=1 // pred_region
      %75 = dma.done [#allocation3], 128
    $region37: #{tpu_custom_call.1} parent=1 // pred_fallthru
      _
    // Predicated region
    $region38: #{tpu_custom_call.1} parent=1 // pred_check
      _
    $region39: #{tpu_custom_call.1} parent=1 // pred_check_branch
      %77 = sbr.rel (0) target = $region41
    $region40: #{tpu_custom_call.1} parent=1 // pred_region
      %78 = dma.done [#allocation6], 128
    $region41: #{tpu_custom_call.1} parent=1 // pred_fallthru
      _
    // Predicated region
    $region42: #{tpu_custom_call.1} parent=1 // pred_check
      _
    $region43: #{tpu_custom_call.1} parent=1 // pred_check_branch
      %80 = sbr.rel (0) target = $region45
    $region44: #{tpu_custom_call.1} parent=1 // pred_region
      %81 = dma.done [#allocation6], 128
    $region45: #{tpu_custom_call.1} parent=1 // pred_fallthru
      _
    // Predicated region
    $region46: #{tpu_custom_call.1} parent=1 // pred_check
      _
    $region47: #{tpu_custom_call.1} parent=1 // pred_check_branch
      %83 = sbr.rel (0) target = $region49
    $region48: #{tpu_custom_call.1} parent=1 // pred_region
      %84 = dma.done [#allocation9], 128
    $region49: #{tpu_custom_call.1} parent=1 // pred_fallthru
      _
    // Predicated region
    $region50: #{tpu_custom_call.1} parent=1 // pred_check
      _
    $region51: #{tpu_custom_call.1} parent=1 // pred_check_branch
      %86 = sbr.rel (0) target = $region53
    $region52: #{tpu_custom_call.1} parent=1 // pred_region
      %87 = dma.done [#allocation9], 64
    $region53: #{tpu_custom_call.1} parent=1 // pred_fallthru
      _
    %v88 = vld [vmem:[#allocation2] sm:$0xff]
    %v89 = vld [vmem:[%s7] sm:$0xf]
    %91 = vset.pattern.permute.xlu0 0
    %92 = vperm.xlu0 %91, %v88
    %v93 = vpop.permute.xlu0 %92
    %v95 = vlaneseq
    %v96 = vshrl.u32 %v95, 7
    %v97 = vsub.s32 0, %v96
    %v98 = vrot.slane %v89, %v97
    %v99 = vmul.f32 %v93, %v98
    %100 = vset.pattern.permute.xlu0 3
    %101 = vperm.xlu0 %100, %v88
    %v102 = vpop.permute.xlu0 %101
    %v104 = vlaneseq
    %v105 = vshrl.u32 %v104, 7
    %v106 = vsub.s32 1, %v105
    %v107 = vrot.slane %v89, %v106
    %v108 = vmul.f32 %v102, %v107
    %v109 = vadd.f32 %v99, %v108
    %110 = vset.pattern.permute.xlu0 6
    %111 = vperm.xlu0 %110, %v88
    %v112 = vpop.permute.xlu0 %111
    %v114 = vlaneseq
    %v115 = vshrl.u32 %v114, 7
    %v116 = vsub.s32 2, %v115
    %v117 = vrot.slane %v89, %v116
    %v118 = vmul.f32 %v112, %v117
    %v119 = vadd.f32 %v109, %v118
    %120 = vset.pattern.permute.xlu0 9
    %121 = vperm.xlu0 %120, %v88
    %v122 = vpop.permute.xlu0 %121
    %v124 = vlaneseq
    %v125 = vshrl.u32 %v124, 7
    %v126 = vsub.s32 3, %v125
    %v127 = vrot.slane %v89, %v126
    %v128 = vmul.f32 %v122, %v127
    %v129 = vadd.f32 %v119, %v128
    %130 = vset.pattern.permute.xlu0 1
    %131 = vperm.xlu0 %130, %v88
    %v132 = vpop.permute.xlu0 %131
    %v134 = vmul.f32 %v132, %v98
    %135 = vset.pattern.permute.xlu0 4
    %136 = vperm.xlu0 %135, %v88
    %v137 = vpop.permute.xlu0 %136
    %v139 = vmul.f32 %v137, %v107
    %v140 = vadd.f32 %v134, %v139
    %141 = vset.pattern.permute.xlu0 7
    %142 = vperm.xlu0 %141, %v88
    %v143 = vpop.permute.xlu0 %142
    %v145 = vmul.f32 %v143, %v117
    %v146 = vadd.f32 %v140, %v145
    %147 = vset.pattern.permute.xlu0 10
    %148 = vperm.xlu0 %147, %v88
    %v149 = vpop.permute.xlu0 %148
    %v151 = vmul.f32 %v149, %v127
    %v152 = vadd.f32 %v146, %v151
    %153 = vset.pattern.permute.xlu0 2
    %154 = vperm.xlu0 %153, %v88
    %v155 = vpop.permute.xlu0 %154
    %v157 = vmul.f32 %v155, %v98
    %158 = vset.pattern.permute.xlu0 5
    %159 = vperm.xlu0 %158, %v88
    %v160 = vpop.permute.xlu0 %159
    %v162 = vmul.f32 %v160, %v107
    %v163 = vadd.f32 %v157, %v162
    %164 = vset.pattern.permute.xlu0 8
    %165 = vperm.xlu0 %164, %v88
    %v166 = vpop.permute.xlu0 %165
    %v168 = vmul.f32 %v166, %v117
    %v169 = vadd.f32 %v163, %v168
    %170 = vset.pattern.permute.xlu0 11
    %171 = vperm.xlu0 %170, %v88
    %v172 = vpop.permute.xlu0 %171
    %v174 = vmul.f32 %v172, %v127
    %v175 = vadd.f32 %v169, %v174
    %v176 = vld [vmem:[%s4] sm:$0x7]
    %v177 = vlaneseq
    %v178 = vshrl.u32 %v177, 7
    %v179 = vsub.s32 0, %v178
    %v180 = vrot.slane %v176, %v179
    %v181 = vmul.f32 %v129, %v180
    %v182 = vlaneseq
    %v183 = vshrl.u32 %v182, 7
    %v184 = vsub.s32 1, %v183
    %v185 = vrot.slane %v176, %v184
    %v186 = vmul.f32 %v152, %v185
    %v187 = vadd.f32 %v181, %v186
    %v188 = vlaneseq
    %v189 = vshrl.u32 %v188, 7
    %v190 = vsub.s32 2, %v189
    %v191 = vrot.slane %v176, %v190
    %v192 = vmul.f32 %v175, %v191
    %v193 = vadd.f32 %v187, %v192
    %v194 = vld [vmem:[%s5] sm:$0x7]
    %v195 = vlaneseq
    %v196 = vshrl.u32 %v195, 7
    %v197 = vsub.s32 0, %v196
    %v198 = vrot.slane %v194, %v197
    %v199 = vmul.f32 %v129, %v198
    %v200 = vlaneseq
    %v201 = vshrl.u32 %v200, 7
    %v202 = vsub.s32 1, %v201
    %v203 = vrot.slane %v194, %v202
    %v204 = vmul.f32 %v152, %v203
    %v205 = vadd.f32 %v199, %v204
    %v206 = vlaneseq
    %v207 = vshrl.u32 %v206, 7
    %v208 = vsub.s32 2, %v207
    %v209 = vrot.slane %v194, %v208
    %v210 = vmul.f32 %v175, %v209
    %v211 = vadd.f32 %v205, %v210
    %v212 = vld [vmem:[#allocation10] sm:$0x7]
    %v213 = vlaneseq
    %v214 = vshrl.u32 %v213, 7
    %v215 = vsub.s32 0, %v214
    %v216 = vrot.slane %v212, %v215
    %v217 = vmul.f32 %v129, %v216
    %v218 = vlaneseq
    %v219 = vshrl.u32 %v218, 7
    %v220 = vsub.s32 1, %v219
    %v221 = vrot.slane %v212, %v220
    %v222 = vmul.f32 %v152, %v221
    %v223 = vadd.f32 %v217, %v222
    %v224 = vlaneseq
    %v225 = vshrl.u32 %v224, 7
    %v226 = vsub.s32 2, %v225
    %v227 = vrot.slane %v212, %v226
    %v228 = vmul.f32 %v175, %v227
    %v229 = vadd.f32 %v223, %v228
    %v230 = vmax.f32 %v193, 0.0
    %v231 = vld [vmem:[#allocation7] sm:$0xff]
    %v232 = vsub.f32 %v231, 1.0
    %v233 = vmax.f32 %v232, 0.0
    %v234 = vand.u32 2147483647, %v232
    %v235 = vsub.f32 0.0, %v234
    %v236 = vmul.f32 %v235, 1.442695
    %v237 = vpow.pop %v236
    %v238 = vadd.f32 %v237, 1.0
    %v239 = vlog2.pop %v238
    %v240 = vmul.f32 %v239, 0.6931472
    %v241 = vmul.f32 -0.5, %v237
    %v242 = vadd.f32 %v241, 1.0
    %v243 = vmul.f32 %v242, %v237
    %v244 = vand.u32 2147483647, %v237
    %vm245 = vcmp.lt.f32.partialorder %v244, 0.0004427343
    %v246 = vsel %vm245, %v243, %v240
    %v247 = vadd.f32 %v233, %v246
    %v248 = vld [vmem:[#allocation8] sm:$0xff]
    %v249 = vsub.f32 %v248, 1.0
    %v250 = vmax.f32 %v249, 0.0
    %v251 = vand.u32 2147483647, %v249
    %v252 = vsub.f32 0.0, %v251
    %v253 = vmul.f32 %v252, 1.442695
    %v254 = vpow.pop %v253
    %v255 = vadd.f32 %v254, 1.0
    %v256 = vlog2.pop %v255
    %v257 = vmul.f32 %v256, 0.6931472
    %v258 = vmul.f32 -0.5, %v254
    %v259 = vadd.f32 %v258, 1.0
    %v260 = vmul.f32 %v259, %v254
    %v261 = vand.u32 2147483647, %v254
    %vm262 = vcmp.lt.f32.partialorder %v261, 0.0004427343
    %v263 = vsel %vm262, %v260, %v257
    %v264 = vadd.f32 %v250, %v263
    %v265 = vsub.f32 0.0, %v247
    %v266 = vmul.f32 %v211, %v211
    %v267 = vmul.f32 %v265, %v266
    %v268 = vmul.f32 %v229, %v229
    %v269 = vmul.f32 %v264, %v268
    %v270 = vsub.f32 %v267, %v269
    %v271 = vld [vmem:[#allocation5] sm:$0xff]
    %v272 = vmul.f32 %v271, %v230
    %v273 = vmul.f32 %v270, 1.442695
    %v274 = vpow.pop %v273
    %v275 = vmul.f32 %v272, %v274
    %276 = vst [vmem:[#allocation11] sm:$0xff] %v275
    // Predicated region
    $region54: #{tpu_custom_call.1} parent=1 // pred_check
      _
    $region55: #{tpu_custom_call.1} parent=1 // pred_check_branch
      %278 = sbr.rel (0) target = $region57
    $region56: #{tpu_custom_call.1} parent=1 // pred_region
      %s280 = ssub.s32 128, 128
      %281 = vsyncadd [#allocation4], %s280
      %s283 = sshll.u32 [#allocation11], 4
      %s284 = int_to_ptr.vmem [resolvable:$true] %s283
      %286 = dma.vmem_to_hbm [thread:$0]  %s284, 128, %s8, [#allocation4]
    $region57: #{tpu_custom_call.1} parent=1 // pred_fallthru
      _
    // Predicated region
    $region58: #{tpu_custom_call.1} parent=1 // pred_check
      _
    $region59: #{tpu_custom_call.1} parent=1 // pred_check_branch
      %288 = sbr.rel (0) target = $region61
    $region60: #{tpu_custom_call.1} parent=1 // pred_region
      %289 = dma.done [#allocation4], 128
    $region61: #{tpu_custom_call.1} parent=1 // pred_fallthru
      _
    %290 = vsyncpa [#allocation3], 1
    %291 = vsyncpa [#allocation6], 1
    %292 = vsyncpa [#allocation9], 1
    %293 = vsyncpa [#allocation4], 1

</llo_original>
